<compile_context>
chip_gen: v6e
topology: v6e:2x2x1
jax: 0.10.0
libtpu: 0.0.40
codegen_flags: <defaults>
</compile_context>

<pallas_src>
import functools

import jax
import jax.numpy as jnp
import numpy as np
from jax.experimental import pallas as pl
from jax.experimental.pallas import tpu as pltpu


_MAX_TILE_BYTES = 4 * 1024 * 1024      # per pipeline buffer (x2 buffers)
_PALLAS_MIN_ELEMENTS = 64 * 1024       # below this, plain JAX is faster


def _round_up(x, m):
    return (x + m - 1) // m * m


def _head_loss_kernel(inv_b, inv_lh, target_ratio, diverse_ratio, g, lh,
                      hs_ref, out_ref, acc_ref):
    """Accumulate packed per-column batch sums; finalize head_loss on last step.

    hs_ref : (TB, g*lh) input tile, native dtype (batch rows packed g-per-row)
    out_ref: (8, 128) f32 slab, every element = head_loss
    acc_ref: (1, g*lh) f32 running sums over the batch axis
    """
    i = pl.program_id(0)

    @pl.when(i == 0)
    def _init():
        acc_ref[...] = jnp.zeros_like(acc_ref)

    # Per-tile f32 cast + sublane reduce, accumulated in f32.
    hs = hs_ref[...].astype(jnp.float32)                         # (TB, g*lh)
    acc_ref[...] += jnp.sum(hs, axis=0, keepdims=True)

    @pl.when(i == pl.num_programs(0) - 1)
    def _finalize():
        acc = acc_ref[...]                                       # (1, g*lh)
        # Un-pack: sum the g lane groups -> per-(layer, head) batch sums.
        per_lh = acc[:, 0:lh]
        for j in range(1, g):
            per_lh = per_lh + acc[:, j * lh:(j + 1) * lh]        # (1, lh)

        per_lh_mean = per_lh * inv_b                             # mean over B
        # diverse_loss = mean_{L,H} | mean_B(head_select) - target |
        diverse = jnp.sum(jnp.abs(per_lh_mean - target_ratio),
                          axis=-1, keepdims=True) * inv_lh       # (1, 1)
        # flops_loss = | mean_{B,L,H}(head_select) - target |
        total_mean = jnp.sum(per_lh_mean, axis=-1, keepdims=True) * inv_lh
        flops = jnp.abs(total_mean - target_ratio)               # (1, 1)

        head_loss = flops + diverse_ratio * diverse              # (1, 1)
        # Single lane-dense, unmasked (8,128) store.
        out_ref[...] = jnp.broadcast_to(head_loss, out_ref.shape)


def _head_loss_pallas(head_select, target_ratio, diverse_ratio):
    B, L, H = head_select.shape
    lh = L * H
    itemsize = jnp.dtype(head_select.dtype).itemsize

    # Lane-packing factor: put g consecutive batch rows on the lane axis when
    # L*H < 128 (free contiguous reshape, no transpose / extra HBM traffic).
    g = max(1, 128 // lh) if lh < 128 else 1
    cols = g * lh

    rows = -(-B // g)                                            # ceil(B / g)
    # Tile rows: multiple of 8, capped so each pipeline buffer <= ~4 MiB
    # (safe for v5e 16 MiB / v6e 32 MiB / v7x 32 MiB scoped-VMEM defaults).
    tb_cap = max(8, (_MAX_TILE_BYTES // max(cols * itemsize, 1)) // 8 * 8)
    tb = min(tb_cap, _round_up(rows, 8))
    rows_pad = _round_up(rows, tb)
    b_pad = rows_pad * g
    num_tiles = rows_pad // tb

    # Free reshape; zero-pad the batch axis (zeros do not perturb the sums,
    # the means divide by the true B).
    hs2d = head_select.reshape(B, lh)
    if b_pad != B:
        hs2d = jnp.pad(hs2d, ((0, b_pad - B), (0, 0)))
    hs2d = hs2d.reshape(rows_pad, cols)

    kernel = functools.partial(
        _head_loss_kernel,
        1.0 / float(B), 1.0 / float(lh),
        float(target_ratio), float(diverse_ratio), g, lh)

    out = pl.pallas_call(
        kernel,
        out_shape=jax.ShapeDtypeStruct((8, 128), jnp.float32),
        grid=(num_tiles,),
        in_specs=[pl.BlockSpec((tb, cols), lambda i: (i, 0))],
        out_specs=pl.BlockSpec((8, 128), lambda i: (0, 0)),
        scratch_shapes=[pltpu.VMEM((1, cols), jnp.float32)],
        compiler_params=pltpu.CompilerParams(
            dimension_semantics=("arbitrary",)),
        cost_estimate=pl.CostEstimate(
            flops=2 * B * lh,
            transcendentals=0,
            bytes_accessed=rows_pad * cols * itemsize + 8 * 128 * 4),
    )(hs2d)
    return out[0, 0]


def _head_loss(head_select, target_ratio, diverse_ratio, use_pallas=None):
    B, L, H = head_select.shape
    if use_pallas is None:
        use_pallas = (B * L * H) >= _PALLAS_MIN_ELEMENTS
    if not use_pallas:
        # Toy sizes: launch overhead dwarfs the 2*B*L*H-flop reduce; XLA fuses
        # this for free.
        hs = head_select.astype(jnp.float32)
        flops = jnp.abs(jnp.mean(hs) - target_ratio)
        diverse = jnp.mean(jnp.abs(jnp.mean(hs, axis=0) - target_ratio))
        return flops + diverse_ratio * diverse
    return _head_loss_pallas(head_select, target_ratio, diverse_ratio)


def _base_criterion(x, y):
    # TODO(synk): base_criterion is an injected dependency with no reference
    # definition; stand-in = standard softmax cross-entropy on the logits x
    # (no ignore_index / label-smoothing parity with the real criterion).
    logp = x.astype(jnp.float32) - jax.nn.logsumexp(
        x.astype(jnp.float32), axis=-1, keepdims=True)
    return jnp.mean(-jnp.take_along_axis(logp, y[:, None], axis=-1)[:, 0])


def ada_head_loss_forward(outputs, y, *, base_criterion=_base_criterion,
                          target_ratio=0.5, head_loss_ratio=2.0,
                          diverse_ratio=0.1, use_pallas=None):
    """JAX/Pallas equivalent of AdaHeadLoss.forward(outputs, y)."""
    assert len(outputs) >= 2
    x, head_select = outputs[:2]

    base_loss = base_criterion(x, y)
    head_loss = _head_loss(head_select, target_ratio, diverse_ratio,
                           use_pallas=use_pallas)
    loss = base_loss + head_loss_ratio * head_loss
    return loss, dict(base_loss=base_loss, head_loss=head_loss)


def _reference(outputs, y, target_ratio=0.5, head_loss_ratio=2.0,
               diverse_ratio=0.1):
    """Pure-JAX mirror of the PyTorch math for verification."""
    x, head_select = outputs[:2]
    base_loss = _base_criterion(x, y)
    hs = head_select.astype(jnp.float32)
    flops_loss = jnp.abs(jnp.mean(hs) - target_ratio)
    diverse_loss = jnp.mean(jnp.abs(jnp.mean(hs, axis=0) - target_ratio))
    head_loss = flops_loss + diverse_ratio * diverse_loss
    loss = base_loss + head_loss_ratio * head_loss
    return loss, base_loss, head_loss


def _check_case(key, B, L, H, C):
    k1, k2, k3 = jax.random.split(key, 3)
    x = jax.random.normal(k1, (B, C), jnp.float32)
    head_select = jax.random.uniform(k2, (B, L, H), jnp.float32)
    y = jax.random.randint(k3, (B,), 0, C)
    outputs = (x, head_select)

    loss, meta = ada_head_loss_forward(outputs, y, use_pallas=True)
    loss = jax.block_until_ready(loss)

    ref_loss, ref_base, ref_head = _reference(outputs, y)
    np.testing.assert_allclose(np.asarray(meta["base_loss"]),
                               np.asarray(ref_base), atol=1e-5, rtol=1e-5)
    np.testing.assert_allclose(np.asarray(meta["head_loss"]),
                               np.asarray(ref_head), atol=1e-5, rtol=1e-5)
    np.testing.assert_allclose(np.asarray(loss),
                               np.asarray(ref_loss), atol=1e-5, rtol=1e-5)


if __name__ == "__main__":
    key = jax.random.PRNGKey(0)
    k_a, k_b = jax.random.split(key)

    # batch=2, num_layers=4, num_heads=8, num_classes=16 (lane-packing g=4)
    _check_case(k_a, B=2, L=4, H=8, C=16)
    # Non-power-of-2 shapes: exercises zero-padding + non-128-multiple lanes.
    _check_case(k_b, B=5, L=3, H=7, C=11)

    print("KERNEL_OK")
</pallas_src>

<mosaic_0001>
module attributes {stable_mosaic.version = 11 : i64} {
  func.func @_head_loss_kernel(%arg0: i32, %arg1: memref<8x128xf32, #tpu.memory_space<vmem>>, %arg2: memref<8x128xf32, #tpu.memory_space<vmem>>, %arg3: memref<1x128xf32, #tpu.memory_space<vmem>>) attributes {dimension_semantics = [#tpu.dimension_semantics<arbitrary>], iteration_bounds = array<i64: 1>, scalar_prefetch = 0 : i64, scratch_operands = 1 : i64, tpu.core_type = #tpu.core_type<tc>, window_params = [{transform_indices = @transform_0, window_bounds = array<i64: 8, 128>}, {pipeline_mode = #tpu.pipeline_mode<synchronous>, transform_indices = @transform_1, window_bounds = array<i64: 8, 128>}]} {
    %c0_i32 = arith.constant 0 : i32
    %0 = arith.cmpi eq, %arg0, %c0_i32 : i32
    %1 = arith.extui %0 : i1 to i32
    %c0_i32_0 = arith.constant 0 : i32
    %2 = arith.cmpi ne, %1, %c0_i32_0 : i32
    scf.if %2 {
      %cst_8 = arith.constant 0.000000e+00 : f32
      %12 = vector.broadcast %cst_8 : f32 to vector<1x128xf32>
      %c0_9 = arith.constant 0 : index
      %c0_10 = arith.constant 0 : index
      %13 = vector.load %arg3[%c0_9, %c0_10] : memref<1x128xf32, #tpu.memory_space<vmem>>, vector<1x128xf32>
      tpu.vector_store %arg3[%c0_9, %c0_10], %12 {strides = array<i32>} : memref<1x128xf32, #tpu.memory_space<vmem>>, vector<1x128xf32>,
    } else {
    }
    %c0 = arith.constant 0 : index
    %c0_1 = arith.constant 0 : index
    %3 = vector.load %arg1[%c0, %c0_1] : memref<8x128xf32, #tpu.memory_space<vmem>>, vector<8x128xf32>
    %c0_2 = arith.constant 0 : index
    %c0_3 = arith.constant 0 : index
    %4 = vector.load %arg3[%c0_2, %c0_3] : memref<1x128xf32, #tpu.memory_space<vmem>>, vector<1x128xf32>
    %cst = arith.constant dense<0.000000e+00> : vector<128xf32>
    %5 = vector.multi_reduction <add>, %3, %cst [0] : vector<8x128xf32> to vector<128xf32>
    %6 = vector.shape_cast %5 : vector<128xf32> to vector<1x128xf32>
    %7 = arith.addf %4, %6 : vector<1x128xf32>
    %c0_4 = arith.constant 0 : index
    %c0_5 = arith.constant 0 : index
    %8 = vector.load %arg3[%c0_4, %c0_5] : memref<1x128xf32, #tpu.memory_space<vmem>>, vector<1x128xf32>
    tpu.vector_store %arg3[%c0_4, %c0_5], %7 {strides = array<i32>} : memref<1x128xf32, #tpu.memory_space<vmem>>, vector<1x128xf32>,
    %c0_i32_6 = arith.constant 0 : i32
    %9 = arith.cmpi eq, %arg0, %c0_i32_6 : i32
    %10 = arith.extui %9 : i1 to i32
    %c0_i32_7 = arith.constant 0 : i32
    %11 = arith.cmpi ne, %10, %c0_i32_7 : i32
    scf.if %11 {
      %c0_8 = arith.constant 0 : index
      %c0_9 = arith.constant 0 : index
      %12 = vector.load %arg3[%c0_8, %c0_9] : memref<1x128xf32, #tpu.memory_space<vmem>>, vector<1x128xf32>
      %13 = vector.extract_strided_slice %12 {offsets = [0, 0], sizes = [1, 32], strides = [1, 1]} : vector<1x128xf32> to vector<1x32xf32>
      %14 = vector.extract_strided_slice %12 {offsets = [0, 32], sizes = [1, 32], strides = [1, 1]} : vector<1x128xf32> to vector<1x32xf32>
      %15 = arith.addf %13, %14 : vector<1x32xf32>
      %16 = vector.extract_strided_slice %12 {offsets = [0, 64], sizes = [1, 32], strides = [1, 1]} : vector<1x128xf32> to vector<1x32xf32>
      %17 = arith.addf %15, %16 : vector<1x32xf32>
      %18 = vector.extract_strided_slice %12 {offsets = [0, 96], sizes = [1, 32], strides = [1, 1]} : vector<1x128xf32> to vector<1x32xf32>
      %19 = arith.addf %17, %18 : vector<1x32xf32>
      %cst_10 = arith.constant 5.000000e-01 : f32
      %20 = vector.broadcast %cst_10 : f32 to vector<1x32xf32>
      %21 = arith.mulf %19, %20 : vector<1x32xf32>
      %cst_11 = arith.constant 5.000000e-01 : f32
      %22 = vector.broadcast %cst_11 : f32 to vector<1x32xf32>
      %23 = arith.subf %21, %22 : vector<1x32xf32>
      %24 = math.absf %23 : vector<1x32xf32>
      %cst_12 = arith.constant dense<0.000000e+00> : vector<1xf32>
      %25 = vector.multi_reduction <add>, %24, %cst_12 [1] : vector<1x32xf32> to vector<1xf32>
      %26 = vector.shape_cast %25 : vector<1xf32> to vector<1x1xf32>
      %cst_13 = arith.constant 3.125000e-02 : f32
      %27 = vector.broadcast %cst_13 : f32 to vector<1x1xf32>
      %28 = arith.mulf %26, %27 : vector<1x1xf32>
      %cst_14 = arith.constant dense<0.000000e+00> : vector<1xf32>
      %29 = vector.multi_reduction <add>, %21, %cst_14 [1] : vector<1x32xf32> to vector<1xf32>
      %30 = vector.shape_cast %29 : vector<1xf32> to vector<1x1xf32>
      %cst_15 = arith.constant 3.125000e-02 : f32
      %31 = vector.broadcast %cst_15 : f32 to vector<1x1xf32>
      %32 = arith.mulf %30, %31 : vector<1x1xf32>
      %cst_16 = arith.constant 5.000000e-01 : f32
      %33 = vector.broadcast %cst_16 : f32 to vector<1x1xf32>
      %34 = arith.subf %32, %33 : vector<1x1xf32>
      %35 = math.absf %34 : vector<1x1xf32>
      %cst_17 = arith.constant 1.000000e-01 : f32
      %36 = vector.broadcast %cst_17 : f32 to vector<1x1xf32>
      %37 = arith.mulf %36, %28 : vector<1x1xf32>
      %38 = arith.addf %35, %37 : vector<1x1xf32>
      %39 = vector.shape_cast %38 : vector<1x1xf32> to vector<1x1xf32>
      %40 = vector.broadcast %39 : vector<1x1xf32> to vector<8x128xf32>
      %c0_18 = arith.constant 0 : index
      %c0_19 = arith.constant 0 : index
      %41 = vector.load %arg2[%c0_18, %c0_19] : memref<8x128xf32, #tpu.memory_space<vmem>>, vector<8x128xf32>
      tpu.vector_store %arg2[%c0_18, %c0_19], %40 {strides = array<i32>} : memref<8x128xf32, #tpu.memory_space<vmem>>, vector<8x128xf32>,
    } else {
    }
    return
  }
  func.func @transform_0(%arg0: i32) -> (i32, i32) {
    %c0_i32 = arith.constant 0 : i32
    %c0_i32_0 = arith.constant 0 : i32
    return %arg0, %c0_i32 : i32, i32
  }
  func.func @transform_1(%arg0: i32) -> (i32, i32) {
    %c0_i32 = arith.constant 0 : i32
    %c0_i32_0 = arith.constant 0 : i32
    %c0_i32_1 = arith.constant 0 : i32
    return %c0_i32, %c0_i32_0 : i32, i32
  }
}

</mosaic_0001>

<llo_original>
// kernel: tpu_custom_call.1
$region0: #{tpu_custom_call.1}
  #allocation0 [shape = 'u32[]', space=smem, size = 0x4, offset = 0x4, fixed_abs, tag = 'smem constant byte address 0x4 - core index']
  #allocation1 [shape = 'u32[144,128]{1,0:T(1,128)}', space=vmem, size = 0x12000, scoped, tag = 'internal scratch']
  #allocation2 [shape = 'f32[1,128]{1,0:T(1,128)}', space=vmem, size = 0x200, scoped, tag = 'scratch operand']
  %s0 = inlined_call_operand.hbm [shape: f32[8,128], index: 0, kind: input, shape index: {}]
  %s1 = inlined_call_operand.hbm [shape: f32[8,128], index: 1, kind: output, shape index: {}]
  %s2 = sld [smem:[#allocation0]]
  $region26: #{tpu_custom_call.1} parent=0
    _
  %s4 = ssub.s32 1, %s2
  %s5 = scalar_select 0, %s4, %s2
  $region1: #{tpu_custom_call.1} parent=0
    #allocation3 [shape = 'u8[4096]{0}', space=vmem, size = 0x1000, scoped, tag = 'input window, operand 0, single buffered']
    #allocation4 [shape = 's32[1]{0}', space=sflag, size = 0x4, scoped, tag = 'scoped memory for tpu_custom_call.1']
    #allocation5 [shape = 's32[1]{0}', space=sflag, size = 0x4, scoped, tag = 'scoped memory for tpu_custom_call.1']
    #allocation6 [shape = 'u8[4096]{0}', space=vmem, size = 0x1000, scoped, tag = 'output window, operand 0, single buffered']
    %6 = vsyncpa [#allocation4], 0
    %7 = vsyncpa [#allocation5], 0
    // Predicated region
    $region2: #{tpu_custom_call.1} parent=1 // pred_check
      _
    $region3: #{tpu_custom_call.1} parent=1 // pred_check_branch
      %9 = sbr.rel (0) target = $region5
    $region4: #{tpu_custom_call.1} parent=1 // pred_region
      %s11 = ssub.s32 128, 128
      %12 = vsyncadd [#allocation4], %s11
      %s14 = sshll.u32 [#allocation3], 4
      %s15 = int_to_ptr.vmem [resolvable:$true] %s14
      %17 = dma.hbm_to_vmem [thread:$0]  %s0, 128, %s15, [#allocation4]
    $region5: #{tpu_custom_call.1} parent=1 // pred_fallthru
      _
    // Predicated region
    $region6: #{tpu_custom_call.1} parent=1 // pred_check
      _
    $region7: #{tpu_custom_call.1} parent=1 // pred_check_branch
      %19 = sbr.rel (0) target = $region9
    $region8: #{tpu_custom_call.1} parent=1 // pred_region
      %20 = dma.done [#allocation4], 128
    $region9: #{tpu_custom_call.1} parent=1 // pred_fallthru
      _
    %p21 = scmp.eq.s32.totalorder 0, 0
    // Predicated region
    $region10: #{tpu_custom_call.1} parent=1 // pred_check
      %p22 = pneg %p21
    $region11: #{tpu_custom_call.1} parent=1 // pred_check_branch
      %24 = sbr.rel (%p22) target = $region13
    $region12: #{tpu_custom_call.1} parent=1 // pred_region
      %25 = vst [vmem:[#allocation2] sm:$0x1] 0.0
    $region13: #{tpu_custom_call.1} parent=1 // pred_fallthru
      _
    %v26 = vld [vmem:[#allocation3] sm:$0xff]
    %v27 = vld [vmem:[#allocation2] sm:$0x1]
    %v28 = vrot.slane %v26, 4
    %v29 = vadd.f32 %v26, %v28
    %v30 = vrot.slane %v29, 2
    %v31 = vadd.f32 %v29, %v30
    %v32 = vrot.slane %v31, 1
    %v33 = vadd.f32 %v31, %v32
    %v34 = vadd.f32 %v27, %v33
    %35 = vst [vmem:[#allocation2] sm:$0x1] %v34
    // Predicated region
    $region14: #{tpu_custom_call.1} parent=1 // pred_check
      %p36 = pneg %p21
    $region15: #{tpu_custom_call.1} parent=1 // pred_check_branch
      %38 = sbr.rel (%p36) target = $region17
    $region16: #{tpu_custom_call.1} parent=1 // pred_region
      %v39 = vld [vmem:[#allocation2] sm:$0x1]
      %41 = vrot.lane.b32.xlu0 %v39, 96
      %v42 = vpop.permute.xlu0 %41
      %v44 = vadd.f32 %v39, %v42
      %45 = vrot.lane.b32.xlu0 %v39, 64
      %v46 = vpop.permute.xlu0 %45
      %v48 = vadd.f32 %v44, %v46
      %49 = vrot.lane.b32.xlu0 %v39, 32
      %v50 = vpop.permute.xlu0 %49
      %v52 = vadd.f32 %v48, %v50
      %v53 = vmul.f32 %v52, 0.5
      %v54 = vsub.f32 %v53, 0.5
      %v55 = vand.u32 2147483647, %v54
      %vm56 = vcmask 253952
      %v57 = vsel %vm56, %v55, 0.0
      %58 = vadd.xlane.f32.xlu0 %v57
      %v59 = vpop.xlane.xlu0 %58
      %v60 = vmul.f32 %v59, 0.03125
      %v61 = vsel %vm56, %v53, 0.0
      %62 = vadd.xlane.f32.xlu0 %v61
      %v63 = vpop.xlane.xlu0 %62
      %v64 = vmul.f32 %v63, 0.03125
      %v65 = vsub.f32 %v64, 0.5
      %v66 = vand.u32 2147483647, %v65
      %v67 = vmul.f32 %v60, 0.1
      %v68 = vadd.f32 %v66, %v67
      %v69 = vlaneseq
      %v70 = vshrl.u32 %v69, 7
      %v71 = vsub.s32 0, %v70
      %v72 = vrot.slane %v68, %v71
      %73 = vst [vmem:[#allocation6] sm:$0xff] %v72
    $region17: #{tpu_custom_call.1} parent=1 // pred_fallthru
      _
    // Predicated region
    $region18: #{tpu_custom_call.1} parent=1 // pred_check
      _
    $region19: #{tpu_custom_call.1} parent=1 // pred_check_branch
      %75 = sbr.rel (0) target = $region21
    $region20: #{tpu_custom_call.1} parent=1 // pred_region
      %s77 = ssub.s32 128, 128
      %78 = vsyncadd [#allocation5], %s77
      %s80 = sshll.u32 [#allocation6], 4
      %s81 = int_to_ptr.vmem [resolvable:$true] %s80
      %83 = dma.vmem_to_hbm [thread:$0]  %s81, 128, %s1, [#allocation5]
    $region21: #{tpu_custom_call.1} parent=1 // pred_fallthru
      _
    // Predicated region
    $region22: #{tpu_custom_call.1} parent=1 // pred_check
      _
    $region23: #{tpu_custom_call.1} parent=1 // pred_check_branch
      %85 = sbr.rel (0) target = $region25
    $region24: #{tpu_custom_call.1} parent=1 // pred_region
      %86 = dma.done [#allocation5], 128
    $region25: #{tpu_custom_call.1} parent=1 // pred_fallthru
      _
    %87 = vsyncpa [#allocation4], 1
    %88 = vsyncpa [#allocation5], 1

</llo_original>
